<compile_context>
chip_gen: v7x
topology: tpu7x:2x2x1
jax: 0.10.0
libtpu: 0.0.40
codegen_flags: <defaults>
</compile_context>

<pallas_src>
import jax
import jax.numpy as jnp
from jax.experimental import pallas as pl
from jax.experimental.pallas import tpu as pltpu

INPUT_DIM = 384
HIDDEN_DIM = 128
OUTPUT_DIM = 3
OUT_PAD = 8             # lane count of the padded fc2 output (== full last dim)
TILE_B_DEFAULT = 2048   # rows per grid step (f32 x-tile ~3 MiB, double-buffered ~6 MiB)


def classifier_kernel(x_ref, w1_ref, b1_ref, w2_ref, b2_ref, o_ref):
    # x_ref : [tb, INPUT_DIM]  (native dtype, cast in-kernel)
    # w1_ref: [INPUT_DIM, HIDDEN_DIM] (compute dtype)   b1_ref: [1, HIDDEN_DIM] (f32)
    # w2_ref: [HIDDEN_DIM, OUT_PAD]   (compute dtype)   b2_ref: [1, OUT_PAD]    (f32)
    # o_ref : [tb, OUT_PAD]   (output dtype)
    x = x_ref[...].astype(w1_ref.dtype)                       # VPU cast, free under DMA
    h = jnp.dot(x, w1_ref[...], preferred_element_type=jnp.float32) + b1_ref[...]
    h = jnp.maximum(h, 0.0)                                    # ReLU (f32, VPU)
    out = jnp.dot(h.astype(w2_ref.dtype), w2_ref[...],
                  preferred_element_type=jnp.float32) + b2_ref[...]
    o_ref[...] = out.astype(o_ref.dtype)


def _round_up(v, m):
    return ((v + m - 1) // m) * m


def classifier_forward(x, w1, b1, w2, b2, *, tile_b=TILE_B_DEFAULT,
                       compute_dtype=jnp.bfloat16):
    """x: [B, 384]; w1: [384, 128]; b1: [1, 128]; w2: [128, 3]; b2: [1, 3]
    -> [B, 3] in x.dtype.  Set compute_dtype=jnp.float32 for strict f32 parity."""
    B = x.shape[0]
    out_dtype = x.dtype

    # --- setup-time (plain JAX) weight prep: pad fc2 to OUT_PAD columns ------
    w2p = (jnp.zeros((HIDDEN_DIM, OUT_PAD), jnp.float32)
           .at[:, :OUTPUT_DIM].set(w2.astype(jnp.float32))).astype(compute_dtype)
    b2p = (jnp.zeros((1, OUT_PAD), jnp.float32)
           .at[:, :OUTPUT_DIM].set(b2.astype(jnp.float32)))
    w1c = w1.astype(compute_dtype)
    b1f = b1.astype(jnp.float32)

    # --- batch tiling (no explicit padding; Pallas masks the edge block) ----
    # Cap tile at ~B/2 (sublane-aligned) so grids for medium batches have >= 2
    # steps and both v7x TensorCores participate; never below 8 rows.
    tb = min(tile_b, max(8, _round_up(pl.cdiv(B, 2), 8)))
    grid = (pl.cdiv(B, tb),)
    rows = grid[0] * tb   # rows actually streamed (incl. masked edge block)

    bytes_accessed = (
        rows * INPUT_DIM * jnp.dtype(x.dtype).itemsize            # stream x
        + rows * OUT_PAD * jnp.dtype(out_dtype).itemsize          # stream out
        + (INPUT_DIM * HIDDEN_DIM + HIDDEN_DIM * OUT_PAD)
        * jnp.dtype(compute_dtype).itemsize                       # weights
        + (HIDDEN_DIM + OUT_PAD) * 4                              # biases
    )
    cost = pl.CostEstimate(
        flops=2 * rows * (INPUT_DIM * HIDDEN_DIM + HIDDEN_DIM * OUT_PAD),
        transcendentals=0,
        bytes_accessed=int(bytes_accessed),
    )

    out = pl.pallas_call(
        classifier_kernel,
        out_shape=jax.ShapeDtypeStruct((B, OUT_PAD), out_dtype),
        grid=grid,
        in_specs=[
            pl.BlockSpec((tb, INPUT_DIM), lambda i: (i, 0)),          # x streams
            pl.BlockSpec((INPUT_DIM, HIDDEN_DIM), lambda i: (0, 0)),  # w1 resident
            pl.BlockSpec((1, HIDDEN_DIM), lambda i: (0, 0)),          # b1 resident
            pl.BlockSpec((HIDDEN_DIM, OUT_PAD), lambda i: (0, 0)),    # w2 resident
            pl.BlockSpec((1, OUT_PAD), lambda i: (0, 0)),             # b2 resident
        ],
        out_specs=pl.BlockSpec((tb, OUT_PAD), lambda i: (i, 0)),      # out streams
        compiler_params=pltpu.CompilerParams(
            dimension_semantics=("parallel",)),   # split batch over TCs on v7x
        cost_estimate=cost,
    )(x, w1c, b1f, w2p, b2p)

    return out[:, :OUTPUT_DIM]


def init_params(key):
    """Deterministic init mimicking nn.Linear defaults (uniform +/- 1/sqrt(fan_in)).
    Weights are stored pre-transposed as [in_features, out_features]."""
    k1, k2, k3, k4 = jax.random.split(key, 4)
    bound1 = 1.0 / (INPUT_DIM ** 0.5)
    bound2 = 1.0 / (HIDDEN_DIM ** 0.5)
    w1 = jax.random.uniform(k1, (INPUT_DIM, HIDDEN_DIM), jnp.float32,
                            minval=-bound1, maxval=bound1)
    b1 = jax.random.uniform(k2, (1, HIDDEN_DIM), jnp.float32,
                            minval=-bound1, maxval=bound1)
    w2 = jax.random.uniform(k3, (HIDDEN_DIM, OUTPUT_DIM), jnp.float32,
                            minval=-bound2, maxval=bound2)
    b2 = jax.random.uniform(k4, (1, OUTPUT_DIM), jnp.float32,
                            minval=-bound2, maxval=bound2)
    return w1, b1, w2, b2


if __name__ == "__main__":
    key = jax.random.PRNGKey(0)
    kx, kp = jax.random.split(key)

    B = 8  # small batch for the self-test (kernel also handles B >> TILE_B_DEFAULT)
    x = jax.random.normal(kx, (B, INPUT_DIM), jnp.float32)
    w1, b1, w2, b2 = init_params(kp)

    out = classifier_forward(x, w1, b1, w2, b2)
    out = jax.block_until_ready(out)

    # Pure-f32 JAX reference of the same forward pass.  The kernel computes the
    # matmuls in bf16 (f32 accumulation), so tolerance covers bf16 quantization.
    ref = jnp.maximum(x @ w1 + b1, 0.0) @ w2 + b2
    assert out.shape == (B, OUTPUT_DIM), out.shape
    assert jnp.allclose(out, ref, atol=2e-2, rtol=2e-2), "mismatch vs reference"

    # Strict-parity path (f32 compute) for good measure.
    out_f32 = jax.block_until_ready(
        classifier_forward(x, w1, b1, w2, b2, compute_dtype=jnp.float32))
    assert jnp.allclose(out_f32, ref, atol=1e-5, rtol=1e-5), "f32 parity mismatch"

    print("KERNEL_OK")
</pallas_src>

<mosaic_0001>
module attributes {stable_mosaic.version = 11 : i64} {
  func.func @classifier_kernel(%arg0: i32, %arg1: memref<8x384xf32, #tpu.memory_space<vmem>>, %arg2: memref<384x128xbf16, #tpu.memory_space<vmem>>, %arg3: memref<1x128xf32, #tpu.memory_space<vmem>>, %arg4: memref<128x8xbf16, #tpu.memory_space<vmem>>, %arg5: memref<1x8xf32, #tpu.memory_space<vmem>>, %arg6: memref<8x8xf32, #tpu.memory_space<vmem>>) attributes {dimension_semantics = [#tpu.dimension_semantics<parallel>], iteration_bounds = array<i64: 1>, scalar_prefetch = 0 : i64, scratch_operands = 0 : i64, tpu.core_type = #tpu.core_type<tc>, window_params = [{transform_indices = @transform_0, window_bounds = array<i64: 8, 384>}, {pipeline_mode = #tpu.pipeline_mode<synchronous>, transform_indices = @transform_1, window_bounds = array<i64: 384, 128>}, {pipeline_mode = #tpu.pipeline_mode<synchronous>, transform_indices = @transform_2, window_bounds = array<i64: 1, 128>}, {pipeline_mode = #tpu.pipeline_mode<synchronous>, transform_indices = @transform_3, window_bounds = array<i64: 128, 8>}, {pipeline_mode = #tpu.pipeline_mode<synchronous>, transform_indices = @transform_4, window_bounds = array<i64: 1, 8>}, {transform_indices = @transform_5, window_bounds = array<i64: 8, 8>}]} {
    %c0 = arith.constant 0 : index
    %c0_0 = arith.constant 0 : index
    %0 = vector.load %arg1[%c0, %c0_0] : memref<8x384xf32, #tpu.memory_space<vmem>>, vector<8x384xf32>
    %1 = arith.truncf %0 : vector<8x384xf32> to vector<8x384xbf16>
    %c0_1 = arith.constant 0 : index
    %c0_2 = arith.constant 0 : index
    %2 = vector.load %arg2[%c0_1, %c0_2] : memref<384x128xbf16, #tpu.memory_space<vmem>>, vector<384x128xbf16>
    %cst = arith.constant dense<0.000000e+00> : vector<8x128xf32>
    %3 = tpu.matmul %1, %2, %cst {dimension_numbers = #tpu.dot_dimension_numbers<[1], [0], [0], [1], [0, 0, 1, 1], [], []>} : vector<8x384xbf16>, vector<384x128xbf16>, vector<8x128xf32> -> vector<8x128xf32>
    %c0_3 = arith.constant 0 : index
    %c0_4 = arith.constant 0 : index
    %4 = vector.load %arg3[%c0_3, %c0_4] : memref<1x128xf32, #tpu.memory_space<vmem>>, vector<1x128xf32>
    %5 = vector.broadcast %4 : vector<1x128xf32> to vector<8x128xf32>
    %6 = arith.addf %3, %5 : vector<8x128xf32>
    %cst_5 = arith.constant 0.000000e+00 : f32
    %7 = vector.broadcast %cst_5 : f32 to vector<8x128xf32>
    %8 = arith.maximumf %6, %7 : vector<8x128xf32>
    %9 = arith.truncf %8 : vector<8x128xf32> to vector<8x128xbf16>
    %c0_6 = arith.constant 0 : index
    %c0_7 = arith.constant 0 : index
    %10 = vector.load %arg4[%c0_6, %c0_7] : memref<128x8xbf16, #tpu.memory_space<vmem>>, vector<128x8xbf16>
    %cst_8 = arith.constant dense<0.000000e+00> : vector<8x8xf32>
    %11 = tpu.matmul %9, %10, %cst_8 {dimension_numbers = #tpu.dot_dimension_numbers<[1], [0], [0], [1], [0, 0, 1, 1], [], []>} : vector<8x128xbf16>, vector<128x8xbf16>, vector<8x8xf32> -> vector<8x8xf32>
    %c0_9 = arith.constant 0 : index
    %c0_10 = arith.constant 0 : index
    %12 = vector.load %arg5[%c0_9, %c0_10] : memref<1x8xf32, #tpu.memory_space<vmem>>, vector<1x8xf32>
    %13 = vector.broadcast %12 : vector<1x8xf32> to vector<8x8xf32>
    %14 = arith.addf %11, %13 : vector<8x8xf32>
    %c0_11 = arith.constant 0 : index
    %c0_12 = arith.constant 0 : index
    %15 = vector.load %arg6[%c0_11, %c0_12] : memref<8x8xf32, #tpu.memory_space<vmem>>, vector<8x8xf32>
    tpu.vector_store %arg6[%c0_11, %c0_12], %14 {strides = array<i32>} : memref<8x8xf32, #tpu.memory_space<vmem>>, vector<8x8xf32>,
    return
  }
  func.func @transform_0(%arg0: i32) -> (i32, i32) {
    %c0_i32 = arith.constant 0 : i32
    %c0_i32_0 = arith.constant 0 : i32
    return %arg0, %c0_i32 : i32, i32
  }
  func.func @transform_1(%arg0: i32) -> (i32, i32) {
    %c0_i32 = arith.constant 0 : i32
    %c0_i32_0 = arith.constant 0 : i32
    %c0_i32_1 = arith.constant 0 : i32
    return %c0_i32, %c0_i32_0 : i32, i32
  }
  func.func @transform_2(%arg0: i32) -> (i32, i32) {
    %c0_i32 = arith.constant 0 : i32
    %c0_i32_0 = arith.constant 0 : i32
    %c0_i32_1 = arith.constant 0 : i32
    return %c0_i32, %c0_i32_0 : i32, i32
  }
  func.func @transform_3(%arg0: i32) -> (i32, i32) {
    %c0_i32 = arith.constant 0 : i32
    %c0_i32_0 = arith.constant 0 : i32
    %c0_i32_1 = arith.constant 0 : i32
    return %c0_i32, %c0_i32_0 : i32, i32
  }
  func.func @transform_4(%arg0: i32) -> (i32, i32) {
    %c0_i32 = arith.constant 0 : i32
    %c0_i32_0 = arith.constant 0 : i32
    %c0_i32_1 = arith.constant 0 : i32
    return %c0_i32, %c0_i32_0 : i32, i32
  }
  func.func @transform_5(%arg0: i32) -> (i32, i32) {
    %c0_i32 = arith.constant 0 : i32
    %c0_i32_0 = arith.constant 0 : i32
    return %arg0, %c0_i32 : i32, i32
  }
}

</mosaic_0001>

<llo_original>
// kernel: tpu_custom_call.1
$region0: #{tpu_custom_call.1}
  #allocation0 [shape = 'u32[]', space=smem, size = 0x4, offset = 0x4, fixed_abs, tag = 'smem constant byte address 0x4 - core index']
  #allocation1 [shape = 'u32[144,128]{1,0:T(1,128)}', space=vmem, size = 0x12000, scoped, tag = 'internal scratch']
  %s0 = inlined_call_operand.vmem [shape: f32[8,384], index: 0, kind: input, shape index: {}]
  %s1 = inlined_call_operand.hbm [shape: bf16[384,128], index: 1, kind: input, shape index: {}]
  %s2 = inlined_call_operand.vmem [shape: f32[1,128], index: 2, kind: input, shape index: {}]
  %s3 = inlined_call_operand.vmem [shape: bf16[128,8], index: 3, kind: input, shape index: {}]
  %s4 = inlined_call_operand.vmem [shape: f32[1,8], index: 4, kind: input, shape index: {}]
  %s5 = inlined_call_operand.hbm [shape: f32[8,8], index: 5, kind: output, shape index: {}]
  %s6 = sld [smem:[#allocation0]]
  $region34: #{tpu_custom_call.1} parent=0
    _
  %s8 = ssub.s32 1, %s6
  %s9 = scalar_select 0, %s8, %s6
  $region1: #{tpu_custom_call.1} parent=0
    #allocation2 [shape = 'u8[98304]{0}', space=vmem, size = 0x18000, scoped, tag = 'input window, operand 1, single buffered']
    #allocation3 [shape = 's32[1]{0}', space=sflag, size = 0x4, scoped, tag = 'scoped memory for tpu_custom_call.1']
    #allocation4 [shape = 's32[1]{0}', space=sflag, size = 0x4, scoped, tag = 'scoped memory for tpu_custom_call.1']
    #allocation5 [shape = 'u8[4096]{0}', space=vmem, size = 0x1000, scoped, tag = 'output window, operand 0, single buffered']
    %10 = vsyncpa [#allocation3], 0
    %11 = vsyncpa [#allocation4], 0
    // Predicated region
    $region2: #{tpu_custom_call.1} parent=1 // pred_check
      _
    $region3: #{tpu_custom_call.1} parent=1 // pred_check_branch
      %13 = sbr.rel (0) target = $region5
    $region4: #{tpu_custom_call.1} parent=1 // pred_region
      _
    $region5: #{tpu_custom_call.1} parent=1 // pred_fallthru
      _
    // Predicated region
    $region6: #{tpu_custom_call.1} parent=1 // pred_check
      _
    $region7: #{tpu_custom_call.1} parent=1 // pred_check_branch
      %15 = sbr.rel (0) target = $region9
    $region8: #{tpu_custom_call.1} parent=1 // pred_region
      %s17 = ssub.s32 3072, 3072
      %18 = vsyncadd [#allocation3], %s17
      %s19 = sshll.u32 [#allocation2], 4
      %s20 = int_to_ptr.vmem [resolvable:$true] %s19
      %25 = dma.hbm_to_vmem [thread:$0]  %s1, 3072, %s20, [#allocation3], 64, 64, 4
    $region9: #{tpu_custom_call.1} parent=1 // pred_fallthru
      _
    // Predicated region
    $region10: #{tpu_custom_call.1} parent=1 // pred_check
      _
    $region11: #{tpu_custom_call.1} parent=1 // pred_check_branch
      %27 = sbr.rel (0) target = $region13
    $region12: #{tpu_custom_call.1} parent=1 // pred_region
      _
    $region13: #{tpu_custom_call.1} parent=1 // pred_fallthru
      _
    // Predicated region
    $region14: #{tpu_custom_call.1} parent=1 // pred_check
      _
    $region15: #{tpu_custom_call.1} parent=1 // pred_check_branch
      %29 = sbr.rel (0) target = $region17
    $region16: #{tpu_custom_call.1} parent=1 // pred_region
      _
    $region17: #{tpu_custom_call.1} parent=1 // pred_fallthru
      _
    // Predicated region
    $region18: #{tpu_custom_call.1} parent=1 // pred_check
      _
    $region19: #{tpu_custom_call.1} parent=1 // pred_check_branch
      %31 = sbr.rel (0) target = $region21
    $region20: #{tpu_custom_call.1} parent=1 // pred_region
      _
    $region21: #{tpu_custom_call.1} parent=1 // pred_fallthru
      _
    // Predicated region
    $region22: #{tpu_custom_call.1} parent=1 // pred_check
      _
    $region23: #{tpu_custom_call.1} parent=1 // pred_check_branch
      %33 = sbr.rel (0) target = $region25
    $region24: #{tpu_custom_call.1} parent=1 // pred_region
      %34 = dma.done [#allocation3], 3072
    $region25: #{tpu_custom_call.1} parent=1 // pred_fallthru
      _
    %v36 = vld [vmem:[%s0] sm:$0xff]
    %v37 = vld [vmem:[%s0 + $0x8] sm:$0xff]
    %v38 = vld [vmem:[%s0 + $0x10] sm:$0xff]
    %v39 = vpack.c.bf16 %v36, %v36
    %v40 = vpack.c.bf16 %v37, %v37
    %v41 = vpack.c.bf16 %v38, %v38
    %v42 = vld [vmem:[#allocation2] sm:$0xf]
    %v43 = vld [vmem:[#allocation2 + $0x4] sm:$0xf]
    %v44 = vld [vmem:[#allocation2 + $0x8] sm:$0xf]
    %v45 = vld [vmem:[#allocation2 + $0xc] sm:$0xf]
    %v46 = vld [vmem:[#allocation2 + $0x10] sm:$0xf]
    %v47 = vld [vmem:[#allocation2 + $0x14] sm:$0xf]
    %v48 = vld [vmem:[#allocation2 + $0x18] sm:$0xf]
    %v49 = vld [vmem:[#allocation2 + $0x1c] sm:$0xf]
    %v50 = vld [vmem:[#allocation2 + $0x20] sm:$0xf]
    %v51 = vld [vmem:[#allocation2 + $0x24] sm:$0xf]
    %v52 = vld [vmem:[#allocation2 + $0x28] sm:$0xf]
    %v53 = vld [vmem:[#allocation2 + $0x2c] sm:$0xf]
    %v54 = vld [vmem:[#allocation2 + $0x30] sm:$0xf]
    %v55 = vld [vmem:[#allocation2 + $0x34] sm:$0xf]
    %v56 = vld [vmem:[#allocation2 + $0x38] sm:$0xf]
    %v57 = vld [vmem:[#allocation2 + $0x3c] sm:$0xf]
    %v58 = vld [vmem:[#allocation2 + $0x40] sm:$0xf]
    %v59 = vld [vmem:[#allocation2 + $0x44] sm:$0xf]
    %v60 = vld [vmem:[#allocation2 + $0x48] sm:$0xf]
    %v61 = vld [vmem:[#allocation2 + $0x4c] sm:$0xf]
    %v62 = vld [vmem:[#allocation2 + $0x50] sm:$0xf]
    %v63 = vld [vmem:[#allocation2 + $0x54] sm:$0xf]
    %v64 = vld [vmem:[#allocation2 + $0x58] sm:$0xf]
    %v65 = vld [vmem:[#allocation2 + $0x5c] sm:$0xf]
    %v66 = vld [vmem:[#allocation2 + $0x60] sm:$0xf]
    %v67 = vld [vmem:[#allocation2 + $0x64] sm:$0xf]
    %v68 = vld [vmem:[#allocation2 + $0x68] sm:$0xf]
    %v69 = vld [vmem:[#allocation2 + $0x6c] sm:$0xf]
    %v70 = vld [vmem:[#allocation2 + $0x70] sm:$0xf]
    %v71 = vld [vmem:[#allocation2 + $0x74] sm:$0xf]
    %v72 = vld [vmem:[#allocation2 + $0x78] sm:$0xf]
    %v73 = vld [vmem:[#allocation2 + $0x7c] sm:$0xf]
    %v74 = vld [vmem:[#allocation2 + $0x80] sm:$0xf]
    %v75 = vld [vmem:[#allocation2 + $0x84] sm:$0xf]
    %v76 = vld [vmem:[#allocation2 + $0x88] sm:$0xf]
    %v77 = vld [vmem:[#allocation2 + $0x8c] sm:$0xf]
    %v78 = vld [vmem:[#allocation2 + $0x90] sm:$0xf]
    %v79 = vld [vmem:[#allocation2 + $0x94] sm:$0xf]
    %v80 = vld [vmem:[#allocation2 + $0x98] sm:$0xf]
    %v81 = vld [vmem:[#allocation2 + $0x9c] sm:$0xf]
    %v82 = vld [vmem:[#allocation2 + $0xa0] sm:$0xf]
    %v83 = vld [vmem:[#allocation2 + $0xa4] sm:$0xf]
    %v84 = vld [vmem:[#allocation2 + $0xa8] sm:$0xf]
    %v85 = vld [vmem:[#allocation2 + $0xac] sm:$0xf]
    %v86 = vld [vmem:[#allocation2 + $0xb0] sm:$0xf]
    %v87 = vld [vmem:[#allocation2 + $0xb4] sm:$0xf]
    %v88 = vld [vmem:[#allocation2 + $0xb8] sm:$0xf]
    %v89 = vld [vmem:[#allocation2 + $0xbc] sm:$0xf]
    %v90 = vld [vmem:[%s2] sm:$0x1]
    %v92 = vlaneseq
    %v93 = vshrl.u32 %v92, 7
    %v94 = vsub.s32 0, %v93
    %v95 = vrot.slane %v90, %v94
    %v145 = vunpack.c.l.b16 %v42
    %v146 = vunpack.c.l.b16 %v43
    %v147 = vunpack.c.l.b16 %v44
    %v148 = vunpack.c.l.b16 %v45
    %v149 = vunpack.c.l.b16 %v46
    %v150 = vunpack.c.l.b16 %v47
    %v151 = vunpack.c.l.b16 %v48
    %v152 = vunpack.c.l.b16 %v49
    %v153 = vunpack.c.l.b16 %v50
    %v154 = vunpack.c.l.b16 %v51
    %v155 = vunpack.c.l.b16 %v52
    %v156 = vunpack.c.l.b16 %v53
    %v157 = vunpack.c.l.b16 %v54
    %v158 = vunpack.c.l.b16 %v55
    %v159 = vunpack.c.l.b16 %v56
    %v160 = vunpack.c.l.b16 %v57
    %v161 = vunpack.c.l.b16 %v58
    %v162 = vunpack.c.l.b16 %v59
    %v163 = vunpack.c.l.b16 %v60
    %v164 = vunpack.c.l.b16 %v61
    %v165 = vunpack.c.l.b16 %v62
    %v166 = vunpack.c.l.b16 %v63
    %v167 = vunpack.c.l.b16 %v64
    %v168 = vunpack.c.l.b16 %v65
    %v169 = vunpack.c.l.b16 %v66
    %v170 = vunpack.c.l.b16 %v67
    %v171 = vunpack.c.l.b16 %v68
    %v172 = vunpack.c.l.b16 %v69
    %v173 = vunpack.c.l.b16 %v70
    %v174 = vunpack.c.l.b16 %v71
    %v175 = vunpack.c.l.b16 %v72
    %v176 = vunpack.c.l.b16 %v73
    %v177 = vunpack.c.l.b16 %v74
    %v178 = vunpack.c.l.b16 %v75
    %v179 = vunpack.c.l.b16 %v76
    %v180 = vunpack.c.l.b16 %v77
    %v181 = vunpack.c.l.b16 %v78
    %v182 = vunpack.c.l.b16 %v79
    %v183 = vunpack.c.l.b16 %v80
    %v184 = vunpack.c.l.b16 %v81
    %v185 = vunpack.c.l.b16 %v82
    %v186 = vunpack.c.l.b16 %v83
    %v187 = vunpack.c.l.b16 %v84
    %v188 = vunpack.c.l.b16 %v85
    %v189 = vunpack.c.l.b16 %v86
    %v190 = vunpack.c.l.b16 %v87
    %v191 = vunpack.c.l.b16 %v88
    %v192 = vunpack.c.l.b16 %v89
    %v193 = vpack.c.b16 %v146, %v145
    %v194 = vpack.c.b16 %v148, %v147
    %v195 = vpack.c.b16 %v150, %v149
    %v196 = vpack.c.b16 %v152, %v151
    %v197 = vpack.c.b16 %v154, %v153
    %v198 = vpack.c.b16 %v156, %v155
    %v199 = vpack.c.b16 %v158, %v157
    %v200 = vpack.c.b16 %v160, %v159
    %v201 = vpack.c.b16 %v162, %v161
    %v202 = vpack.c.b16 %v164, %v163
    %v203 = vpack.c.b16 %v166, %v165
    %v204 = vpack.c.b16 %v168, %v167
    %v205 = vpack.c.b16 %v170, %v169
    %v206 = vpack.c.b16 %v172, %v171
    %v207 = vpack.c.b16 %v174, %v173
    %v208 = vpack.c.b16 %v176, %v175
    %v209 = vpack.c.b16 %v178, %v177
    %v210 = vpack.c.b16 %v180, %v179
    %v211 = vpack.c.b16 %v182, %v181
    %v212 = vpack.c.b16 %v184, %v183
    %v213 = vpack.c.b16 %v186, %v185
    %v214 = vpack.c.b16 %v188, %v187
    %v215 = vpack.c.b16 %v190, %v189
    %v216 = vpack.c.b16 %v192, %v191
    %241 = vmatprep.subr.bf16.mxu0 0
    %242 = vmatpush1.bf16.msra.mxu0 %v193
    %243 = vmatprep.subr.bf16.mxu0 0
    %244 = vmatpush1.bf16.msra.mxu0 %v194
    %245 = vmatprep.subr.bf16.mxu0 0
    %246 = vmatpush1.bf16.msra.mxu0 %v195
    %247 = vmatprep.subr.bf16.mxu0 0
    %248 = vmatpush1.bf16.msra.mxu0 %v196
    %249 = vmatprep.subr.bf16.mxu0 0
    %250 = vmatpush1.bf16.msra.mxu0 %v197
    %251 = vmatprep.subr.bf16.mxu0 0
    %252 = vmatpush1.bf16.msra.mxu0 %v198
    %253 = vmatprep.subr.bf16.mxu0 0
    %254 = vmatpush1.bf16.msra.mxu0 %v199
    %255 = vmatprep.subr.bf16.mxu0 0
    %256 = vmatpush1.bf16.msra.mxu0 %v200
    %257 = vmatprep.subr.bf16.mxu0 0
    %258 = vmatpush1.bf16.msra.mxu0 %v201
    %259 = vmatprep.subr.bf16.mxu0 0
    %260 = vmatpush1.bf16.msra.mxu0 %v202
    %261 = vmatprep.subr.bf16.mxu0 0
    %262 = vmatpush1.bf16.msra.mxu0 %v203
    %263 = vmatprep.subr.bf16.mxu0 0
    %264 = vmatpush1.bf16.msra.mxu0 %v204
    %265 = vmatprep.subr.bf16.mxu0 0
    %266 = vmatpush1.bf16.msra.mxu0 %v205
    %267 = vmatprep.subr.bf16.mxu0 0
    %268 = vmatpush1.bf16.msra.mxu0 %v206
    %269 = vmatprep.subr.bf16.mxu0 0
    %270 = vmatpush1.bf16.msra.mxu0 %v207
    %271 = vmatprep.subr.bf16.mxu0 0
    %272 = vmatpush1.bf16.msra.mxu0 %v208
    %273 = vmatprep.mubr.bf16.mxu0 %v40
    %274 = vmatmul.mubr.bf16.gmra.mrb[0].mxu0 %v39
    %v275 = vpop.f32.mrb[0].mxu0
    %v276 = vadd.f32 %v95, %v275
    %v277 = vpop.f32.mrb[0].mxu0
    %v278 = vpop.f32.mrb[0].mxu0
    %v279 = vpop.f32.mrb[0].mxu0
    %280 = vdwg.mxu0
    %281 = vmatprep.subr.bf16.mxu0 0
    %282 = vmatpush1.bf16.msra.mxu0 %v209
    %283 = vmatprep.subr.bf16.mxu0 0
    %284 = vmatpush1.bf16.msra.mxu0 %v210
    %285 = vmatprep.subr.bf16.mxu0 0
    %286 = vmatpush1.bf16.msra.mxu0 %v211
    %287 = vmatprep.subr.bf16.mxu0 0
    %288 = vmatpush1.bf16.msra.mxu0 %v212
    %289 = vmatprep.subr.bf16.mxu0 0
    %290 = vmatpush1.bf16.msra.mxu0 %v213
    %291 = vmatprep.subr.bf16.mxu0 0
    %292 = vmatpush1.bf16.msra.mxu0 %v214
    %293 = vmatprep.subr.bf16.mxu0 0
    %294 = vmatpush1.bf16.msra.mxu0 %v215
    %295 = vmatprep.subr.bf16.mxu0 0
    %296 = vmatpush1.bf16.msra.mxu0 %v216
    %297 = vmatprep.subr.bf16.mxu0 0
    %298 = vmatpush1.bf16.msra.mxu0 0
    %299 = vmatprep.subr.bf16.mxu0 0
    %300 = vmatpush1.bf16.msra.mxu0 0
    %301 = vmatprep.subr.bf16.mxu0 0
    %302 = vmatpush1.bf16.msra.mxu0 0
    %303 = vmatprep.subr.bf16.mxu0 0
    %304 = vmatpush1.bf16.msra.mxu0 0
    %305 = vmatprep.subr.bf16.mxu0 0
    %306 = vmatpush1.bf16.msra.mxu0 0
    %307 = vmatprep.subr.bf16.mxu0 0
    %308 = vmatpush1.bf16.msra.mxu0 0
    %309 = vmatprep.subr.bf16.mxu0 0
    %310 = vmatpush1.bf16.msra.mxu0 0
    %311 = vmatprep.subr.bf16.mxu0 0
    %312 = vmatpush1.bf16.msra.mxu0 0
    %313 = vmatprep.mubr.bf16.mxu0 0
    %314 = vmatmul.mubr.bf16.gmra.mrb[0].mxu0 %v41
    %v315 = vpop.f32.mrb[0].mxu0
    %v316 = vadd.f32 %v276, %v315
    %v317 = vpop.f32.mrb[0].mxu0
    %v318 = vpop.f32.mrb[0].mxu0
    %v319 = vpop.f32.mrb[0].mxu0
    %320 = vdwg.mxu0
    %v321 = vmax.f32 %v316, 0.0
    %v322 = vpack.c.bf16 %v321, %v321
    %v323 = vld [vmem:[%s3] sm:$0xf]
    %v324 = vld [vmem:[%s3 + $0x4] sm:$0xf]
    %v325 = vld [vmem:[%s3 + $0x8] sm:$0xf]
    %v326 = vld [vmem:[%s3 + $0xc] sm:$0xf]
    %v327 = vld [vmem:[%s3 + $0x10] sm:$0xf]
    %v328 = vld [vmem:[%s3 + $0x14] sm:$0xf]
    %v329 = vld [vmem:[%s3 + $0x18] sm:$0xf]
    %v330 = vld [vmem:[%s3 + $0x1c] sm:$0xf]
    %v331 = vld [vmem:[%s3 + $0x20] sm:$0xf]
    %v332 = vld [vmem:[%s3 + $0x24] sm:$0xf]
    %v333 = vld [vmem:[%s3 + $0x28] sm:$0xf]
    %v334 = vld [vmem:[%s3 + $0x2c] sm:$0xf]
    %v335 = vld [vmem:[%s3 + $0x30] sm:$0xf]
    %v336 = vld [vmem:[%s3 + $0x34] sm:$0xf]
    %v337 = vld [vmem:[%s3 + $0x38] sm:$0xf]
    %v338 = vld [vmem:[%s3 + $0x3c] sm:$0xf]
    %v339 = vld [vmem:[%s4] sm:$0x1]
    %v341 = vlaneseq
    %v342 = vshrl.u32 %v341, 7
    %v343 = vsub.s32 0, %v342
    %v344 = vrot.slane %v339, %v343
    %v362 = vunpack.c.l.b16 %v323
    %v363 = vunpack.c.l.b16 %v324
    %v364 = vunpack.c.l.b16 %v325
    %v365 = vunpack.c.l.b16 %v326
    %v366 = vunpack.c.l.b16 %v327
    %v367 = vunpack.c.l.b16 %v328
    %v368 = vunpack.c.l.b16 %v329
    %v369 = vunpack.c.l.b16 %v330
    %v370 = vunpack.c.l.b16 %v331
    %v371 = vunpack.c.l.b16 %v332
    %v372 = vunpack.c.l.b16 %v333
    %v373 = vunpack.c.l.b16 %v334
    %v374 = vunpack.c.l.b16 %v335
    %v375 = vunpack.c.l.b16 %v336
    %v376 = vunpack.c.l.b16 %v337
    %v377 = vunpack.c.l.b16 %v338
    %v378 = vpack.c.b16 %v363, %v362
    %v379 = vpack.c.b16 %v365, %v364
    %v380 = vpack.c.b16 %v367, %v366
    %v381 = vpack.c.b16 %v369, %v368
    %v382 = vpack.c.b16 %v371, %v370
    %v383 = vpack.c.b16 %v373, %v372
    %v384 = vpack.c.b16 %v375, %v374
    %v385 = vpack.c.b16 %v377, %v376
    %394 = vmatprep.subr.bf16.mxu0 0
    %395 = vmatpush1.bf16.msra.mxu0 %v378
    %396 = vmatprep.subr.bf16.mxu0 0
    %397 = vmatpush1.bf16.msra.mxu0 %v379
    %398 = vmatprep.subr.bf16.mxu0 0
    %399 = vmatpush1.bf16.msra.mxu0 %v380
    %400 = vmatprep.subr.bf16.mxu0 0
    %401 = vmatpush1.bf16.msra.mxu0 %v381
    %402 = vmatprep.subr.bf16.mxu0 0
    %403 = vmatpush1.bf16.msra.mxu0 %v382
    %404 = vmatprep.subr.bf16.mxu0 0
    %405 = vmatpush1.bf16.msra.mxu0 %v383
    %406 = vmatprep.subr.bf16.mxu0 0
    %407 = vmatpush1.bf16.msra.mxu0 %v384
    %408 = vmatprep.subr.bf16.mxu0 0
    %409 = vmatpush1.bf16.msra.mxu0 %v385
    %410 = vmatprep.subr.bf16.mxu0 0
    %411 = vmatpush1.bf16.msra.mxu0 0
    %412 = vmatprep.subr.bf16.mxu0 0
    %413 = vmatpush1.bf16.msra.mxu0 0
    %414 = vmatprep.subr.bf16.mxu0 0
    %415 = vmatpush1.bf16.msra.mxu0 0
    %416 = vmatprep.subr.bf16.mxu0 0
    %417 = vmatpush1.bf16.msra.mxu0 0
    %418 = vmatprep.subr.bf16.mxu0 0
    %419 = vmatpush1.bf16.msra.mxu0 0
    %420 = vmatprep.subr.bf16.mxu0 0
    %421 = vmatpush1.bf16.msra.mxu0 0
    %422 = vmatprep.subr.bf16.mxu0 0
    %423 = vmatpush1.bf16.msra.mxu0 0
    %424 = vmatprep.subr.bf16.mxu0 0
    %425 = vmatpush1.bf16.msra.mxu0 0
    %426 = vmatprep.mubr.bf16.mxu0 0
    %427 = vmatmul.mubr.bf16.gmra.mrb[0].mxu0 %v322
    %v428 = vpop.f32.mrb[0].mxu0
    %v429 = vadd.f32 %v344, %v428
    %v430 = vpop.f32.mrb[0].mxu0
    %v431 = vpop.f32.mrb[0].mxu0
    %v432 = vpop.f32.mrb[0].mxu0
    %433 = vdwg.mxu0
    %vm434 = vcmask 64512
    %435 = vst.msk [vmem:[#allocation5] sm:$0xff] %vm434, %v429
    // Predicated region
    $region26: #{tpu_custom_call.1} parent=1 // pred_check
      _
    $region27: #{tpu_custom_call.1} parent=1 // pred_check_branch
      %437 = sbr.rel (0) target = $region29
    $region28: #{tpu_custom_call.1} parent=1 // pred_region
      %s439 = ssub.s32 128, 128
      %440 = vsyncadd [#allocation4], %s439
      %s442 = sshll.u32 [#allocation5], 4
      %s443 = int_to_ptr.vmem [resolvable:$true] %s442
      %445 = dma.vmem_to_hbm [thread:$0]  %s443, 128, %s5, [#allocation4]
    $region29: #{tpu_custom_call.1} parent=1 // pred_fallthru
      _
    // Predicated region
    $region30: #{tpu_custom_call.1} parent=1 // pred_check
      _
    $region31: #{tpu_custom_call.1} parent=1 // pred_check_branch
      %447 = sbr.rel (0) target = $region33
    $region32: #{tpu_custom_call.1} parent=1 // pred_region
      %448 = dma.done [#allocation4], 128
    $region33: #{tpu_custom_call.1} parent=1 // pred_fallthru
      _
    %449 = vsyncpa [#allocation3], 1
    %450 = vsyncpa [#allocation4], 1

</llo_original>
